<compile_context>
chip_gen: v7x
topology: tpu7x:2x2x1
jax: 0.10.0
libtpu: 0.0.40
codegen_flags: <defaults>
</compile_context>

<pallas_src>
import functools

import jax
import jax.numpy as jnp
from jax import lax
from jax.experimental import pallas as pl
from jax.experimental.pallas import tpu as pltpu


# -----------------------------------------------------------------------------
# Pallas kernel: per-row-tile partial sum of the soft cross-entropy, computed
# with an online (flash-style) pass over vocab chunks.
# -----------------------------------------------------------------------------
def _ce_kernel(temp_ref,                          # (1,1) f32 in SMEM
               x_ref, t_ref,                      # (tile, D) f32 activations
               wo_ref, wt_ref,                    # (D, Vc) bf16 unembedding chunks
               out_ref,                           # (1,1,1) f32 partial sum
               m_ref, l_ref, tm_ref, ts_ref, td_ref,   # (tile,1) f32 scratch
               *, n_valid, tile_rows, v_chunk, v_total, v_ragged):
    i = pl.program_id(0)          # row tile
    j = pl.program_id(1)          # vocab chunk (reduction axis, iterated last)

    @pl.when(j == 0)
    def _init():
        m_ref[...] = jnp.full_like(m_ref, -jnp.inf)    # student running max
        l_ref[...] = jnp.zeros_like(l_ref)             # student running sum(exp)
        tm_ref[...] = jnp.full_like(tm_ref, -jnp.inf)  # teacher running max
        ts_ref[...] = jnp.zeros_like(ts_ref)           # teacher running sum(exp)
        td_ref[...] = jnp.zeros_like(td_ref)           # running sum(exp_t * logit_s)

    # Fold temperature into the small (tile, D) activation tile in f32, then
    # cast once to bf16 so the MXU runs at native rate with f32 accumulation.
    temp = temp_ref[0, 0]
    xs = (x_ref[...] * temp).astype(jnp.bfloat16)
    tb = t_ref[...].astype(jnp.bfloat16)

    logits = jnp.dot(xs, wo_ref[...], preferred_element_type=jnp.float32)  # (tile, Vc)
    tgt = jnp.dot(tb, wt_ref[...], preferred_element_type=jnp.float32)     # (tile, Vc)

    # Mask out-of-range vocab columns (only traced when V % Vc != 0; only the
    # last chunk can be ragged). -1e30 underflows to exp()==0 without NaNs.
    if v_ragged:
        col = j * v_chunk + lax.broadcasted_iota(jnp.int32, (tile_rows, v_chunk), 1)
        valid_col = col < v_total
        neg = jnp.float32(-1e30)
        logits = jnp.where(valid_col, logits, neg)
        tgt = jnp.where(valid_col, tgt, neg)

    # --- student: online logsumexp ---
    m_prev = m_ref[...]
    m_new = jnp.maximum(m_prev, jnp.max(logits, axis=-1, keepdims=True))
    l_ref[...] = (l_ref[...] * jnp.exp(m_prev - m_new)
                  + jnp.sum(jnp.exp(logits - m_new), axis=-1, keepdims=True))
    m_ref[...] = m_new

    # --- teacher: online sum(exp) and sum(exp * student_logit) ---
    tm_prev = tm_ref[...]
    tm_new = jnp.maximum(tm_prev, jnp.max(tgt, axis=-1, keepdims=True))
    alpha = jnp.exp(tm_prev - tm_new)
    te = jnp.exp(tgt - tm_new)
    ts_ref[...] = ts_ref[...] * alpha + jnp.sum(te, axis=-1, keepdims=True)
    td_ref[...] = td_ref[...] * alpha + jnp.sum(te * logits, axis=-1, keepdims=True)
    tm_ref[...] = tm_new

    @pl.when(j == pl.num_programs(1) - 1)
    def _finalize():
        # loss = lse(logits) - E_{softmax(tgt)}[logits]
        lse = m_ref[...] + jnp.log(l_ref[...])
        row_loss = lse - td_ref[...] / ts_ref[...]                 # (tile, 1)
        row_idx = i * tile_rows + lax.broadcasted_iota(jnp.int32, (tile_rows, 1), 0)
        row_loss = jnp.where(row_idx < n_valid, row_loss, 0.0)     # mask ragged rows
        out_ref[...] = jnp.sum(row_loss, axis=0, keepdims=True)[None]


def _round_up(x, m):
    return ((x + m - 1) // m) * m


def _vmem_capacity_bytes():
    try:
        cap = int(getattr(pltpu.get_tpu_info(), "vmem_capacity_bytes", 0))
        if cap > 0:
            return cap
    except Exception:
        pass
    return 64 << 20   # conservative (v7x per-core)


def _mean_cross_entropy_pallas(output, output_unembedding,
                               target, target_unembedding, temperature,
                               tile_rows=None, v_chunk=None):
    B, S, D = output.shape
    V = output_unembedding.shape[0]
    N = B * S

    # No padding, no wrapper bf16 round-trip of activations: pass f32 rows
    # straight through; ragged tails are masked in-kernel.
    x = output.reshape(N, D)
    t = target.reshape(N, D)
    # One-time layout plumbing: (V, D) -> (D, V), bf16, vocab on the lane axis.
    wo_t = output_unembedding.T.astype(jnp.bfloat16)
    wt_t = target_unembedding.T.astype(jnp.bfloat16)

    # Row tile: default 256 (MXU-friendly), multiple of 8, clamped for tiny N.
    if tile_rows is None:
        tile_rows = 256
    tile_rows = int(min(_round_up(max(int(tile_rows), 8), 8), _round_up(N, 8)))

    # Vocab chunk: multiple of 128 (or the whole vocab), sized so the
    # double-buffered bf16 weight chunks and the live (tile,Vc) f32
    # temporaries stay well inside v7x's 64 MiB VMEM.
    if v_chunk is None:
        vc = min(2048, (2 << 20) // max(D, 1), (1 << 20) // tile_rows)
        vc = max(128, (vc // 128) * 128)
        v_chunk = V if V <= vc else vc
    v_chunk = int(v_chunk)

    num_row_tiles = -(-N // tile_rows)
    num_v_chunks = -(-V // v_chunk)
    v_ragged = (V % v_chunk) != 0

    temp = jnp.asarray(temperature, jnp.float32).reshape(1, 1)

    kernel = functools.partial(
        _ce_kernel, n_valid=N, tile_rows=tile_rows, v_chunk=v_chunk,
        v_total=V, v_ragged=v_ragged)

    # Accurate VMEM accounting: double-buffered activation tiles + weight
    # chunks, live (tile,Vc) f32 intermediates, per-row state, +25% headroom.
    act_bytes = 2 * 2 * tile_rows * D * 4
    w_bytes = 2 * 2 * D * v_chunk * 2
    tmp_bytes = 5 * tile_rows * v_chunk * 4
    state_bytes = 5 * tile_rows * 4 + 2 * 8
    needed = act_bytes + w_bytes + tmp_bytes + state_bytes
    vmem_limit = int(min(int(0.75 * _vmem_capacity_bytes()),
                         max(24 << 20, int(1.25 * needed) + (2 << 20))))

    partials = pl.pallas_call(
        kernel,
        out_shape=jax.ShapeDtypeStruct((num_row_tiles, 1, 1), jnp.float32),
        grid_spec=pltpu.PrefetchScalarGridSpec(
            num_scalar_prefetch=0,
            grid=(num_row_tiles, num_v_chunks),
            in_specs=[
                pl.BlockSpec(memory_space=pltpu.SMEM),                  # temperature
                pl.BlockSpec((tile_rows, D), lambda i, j: (i, 0)),      # output rows
                pl.BlockSpec((tile_rows, D), lambda i, j: (i, 0)),      # target rows
                pl.BlockSpec((D, v_chunk), lambda i, j: (0, j)),        # wo^T chunk
                pl.BlockSpec((D, v_chunk), lambda i, j: (0, j)),        # wt^T chunk
            ],
            out_specs=pl.BlockSpec((1, 1, 1), lambda i, j: (i, 0, 0)),
            scratch_shapes=[pltpu.VMEM((tile_rows, 1), jnp.float32)] * 5,
        ),
        compiler_params=pltpu.CompilerParams(
            dimension_semantics=("parallel", "arbitrary"),   # rows across cores (v7x)
            vmem_limit_bytes=vmem_limit),
    )(temp, x, t, wo_t, wt_t)

    return jnp.sum(partials) / jnp.float32(N)


# -----------------------------------------------------------------------------
# Glue: LossNetworkBase.loss_to_distrib (20-element binomial pmf head).
# Tiny (20 scalars) — plain JAX, not worth a kernel.
# -----------------------------------------------------------------------------
def loss_to_distrib(loss, output_dim=20, maximum=20.0):
    clip_loss = jnp.clip(loss, -maximum, maximum)
    p = (clip_loss + maximum) / (2.0 * maximum)
    n = float(output_dim - 1)
    k = jnp.arange(output_dim, dtype=jnp.float32)
    log_binom_coeff = (jax.scipy.special.gammaln(n + 1.0)
                       - jax.scipy.special.gammaln(k + 1.0)
                       - jax.scipy.special.gammaln(n - k + 1.0))
    log_prob = (log_binom_coeff
                + jax.scipy.special.xlogy(k, p)
                + jax.scipy.special.xlogy(n - k, 1.0 - p))
    return jnp.exp(log_prob)


def cross_entropy_loss_forward(output, output_unembedding,
                               target, target_unembedding,
                               temperature, output_dim=20, maximum=20.0):
    mean_loss = _mean_cross_entropy_pallas(
        output, output_unembedding, target, target_unembedding, temperature)
    return loss_to_distrib(mean_loss, output_dim=output_dim, maximum=maximum)


# -----------------------------------------------------------------------------
# Pure-JAX references (mirror the PyTorch forward) for correctness checks.
# -----------------------------------------------------------------------------
def _reference_mean_loss(output, output_unembedding, target, target_unembedding,
                         temperature):
    logits = temperature * jnp.matmul(output, output_unembedding.T)
    target_logits = jnp.matmul(target, target_unembedding.T)
    target_probs = jax.nn.softmax(target_logits, axis=-1)
    log_probs = jax.nn.log_softmax(logits, axis=-1)
    loss = -jnp.sum(target_probs * log_probs, axis=-1)
    return jnp.mean(loss, axis=(0, 1))


def _reference_forward(output, output_unembedding, target, target_unembedding,
                       temperature, output_dim=20, maximum=20.0):
    mean_loss = _reference_mean_loss(output, output_unembedding,
                                     target, target_unembedding, temperature)
    return loss_to_distrib(mean_loss, output_dim=output_dim, maximum=maximum)


if __name__ == "__main__":
    # Module parameters: CrossEntropyLoss(output_dim=20, maximum=20),
    # temperature = nn.Parameter(torch.Tensor([1])) -> 1.0
    OUTPUT_DIM = 20
    MAXIMUM = 20.0

    key = jax.random.PRNGKey(0)
    k1, k2, k3, k4, k5, k6, k7, k8 = jax.random.split(key, 8)

    def _bf16_rt(a):
        # the kernel feeds the MXU in bf16 with f32 accumulation
        return a.astype(jnp.bfloat16).astype(jnp.float32)

    # --- check 1: full forward, nominal shapes, temperature = 1 ---
    B, S, D, V = 2, 8, 32, 128
    output = jax.random.normal(k1, (B, S, D), dtype=jnp.float32)
    target = jax.random.normal(k2, (B, S, D), dtype=jnp.float32)
    output_unembedding = jax.random.normal(k3, (V, D), dtype=jnp.float32)
    target_unembedding = jax.random.normal(k4, (V, D), dtype=jnp.float32)
    temperature = jnp.float32(1.0)

    distrib = cross_entropy_loss_forward(
        output, output_unembedding, target, target_unembedding,
        temperature, output_dim=OUTPUT_DIM, maximum=MAXIMUM)
    distrib = jax.block_until_ready(distrib)

    ref = _reference_forward(
        _bf16_rt(output), _bf16_rt(output_unembedding),
        _bf16_rt(target), _bf16_rt(target_unembedding),
        temperature, output_dim=OUTPUT_DIM, maximum=MAXIMUM)

    assert distrib.shape == (OUTPUT_DIM,)
    assert jnp.allclose(distrib, ref, rtol=5e-2, atol=1e-3), (distrib, ref)

    # --- check 2: ragged N and V, temperature != 1, forced small tiles to
    #     exercise the row-mask and ragged-vocab-chunk paths ---
    B2, S2, D2, V2 = 3, 7, 32, 160
    out2 = jax.random.normal(k5, (B2, S2, D2), dtype=jnp.float32)
    tgt2 = jax.random.normal(k6, (B2, S2, D2), dtype=jnp.float32)
    wo2 = jax.random.normal(k7, (V2, D2), dtype=jnp.float32)
    wt2 = jax.random.normal(k8, (V2, D2), dtype=jnp.float32)
    temp2 = jnp.float32(0.5)

    loss2 = _mean_cross_entropy_pallas(out2, wo2, tgt2, wt2, temp2,
                                       tile_rows=8, v_chunk=128)
    loss2 = jax.block_until_ready(loss2)
    ref_loss2 = _reference_mean_loss(_bf16_rt(out2), _bf16_rt(wo2),
                                     _bf16_rt(tgt2), _bf16_rt(wt2), temp2)
    assert jnp.allclose(loss2, ref_loss2, rtol=2e-2, atol=1e-2), (loss2, ref_loss2)

    print("KERNEL_OK")
</pallas_src>

<mosaic_0001>
module attributes {stable_mosaic.version = 11 : i64} {
  func.func @_ce_kernel(%arg0: i32, %arg1: i32, %arg2: memref<1x1xf32, #tpu.memory_space<smem>>, %arg3: memref<16x32xf32, #tpu.memory_space<vmem>>, %arg4: memref<16x32xf32, #tpu.memory_space<vmem>>, %arg5: memref<32x128xbf16, #tpu.memory_space<vmem>>, %arg6: memref<32x128xbf16, #tpu.memory_space<vmem>>, %arg7: memref<1x1x1xf32, #tpu.memory_space<vmem>>, %arg8: memref<16x1xf32, #tpu.memory_space<vmem>>, %arg9: memref<16x1xf32, #tpu.memory_space<vmem>>, %arg10: memref<16x1xf32, #tpu.memory_space<vmem>>, %arg11: memref<16x1xf32, #tpu.memory_space<vmem>>, %arg12: memref<16x1xf32, #tpu.memory_space<vmem>>) attributes {dimension_semantics = [#tpu.dimension_semantics<parallel>, #tpu.dimension_semantics<arbitrary>], iteration_bounds = array<i64: 1, 1>, scalar_prefetch = 0 : i64, scratch_operands = 5 : i64, tpu.core_type = #tpu.core_type<tc>, window_params = [{transform_indices = @transform_0, window_bounds = array<i64: 1, 1>}, {transform_indices = @transform_1, window_bounds = array<i64: 16, 32>}, {transform_indices = @transform_2, window_bounds = array<i64: 16, 32>}, {transform_indices = @transform_3, window_bounds = array<i64: 32, 128>}, {transform_indices = @transform_4, window_bounds = array<i64: 32, 128>}, {transform_indices = @transform_5, window_bounds = array<i64: 1, 1, 1>}]} {
    %c0_i32 = arith.constant 0 : i32
    %0 = arith.cmpi eq, %arg1, %c0_i32 : i32
    %1 = arith.extui %0 : i1 to i32
    %c0_i32_0 = arith.constant 0 : i32
    %2 = arith.cmpi ne, %1, %c0_i32_0 : i32
    scf.if %2 {
      %cst_38 = arith.constant 0xFF800000 : f32
      %56 = vector.broadcast %cst_38 : f32 to vector<16x1xf32>
      %c0_39 = arith.constant 0 : index
      %c0_40 = arith.constant 0 : index
      %57 = vector.load %arg8[%c0_39, %c0_40] : memref<16x1xf32, #tpu.memory_space<vmem>>, vector<16x1xf32>
      tpu.vector_store %arg8[%c0_39, %c0_40], %56 {strides = array<i32>} : memref<16x1xf32, #tpu.memory_space<vmem>>, vector<16x1xf32>,
      %cst_41 = arith.constant 0.000000e+00 : f32
      %58 = vector.broadcast %cst_41 : f32 to vector<16x1xf32>
      %c0_42 = arith.constant 0 : index
      %c0_43 = arith.constant 0 : index
      %59 = vector.load %arg9[%c0_42, %c0_43] : memref<16x1xf32, #tpu.memory_space<vmem>>, vector<16x1xf32>
      tpu.vector_store %arg9[%c0_42, %c0_43], %58 {strides = array<i32>} : memref<16x1xf32, #tpu.memory_space<vmem>>, vector<16x1xf32>,
      %cst_44 = arith.constant 0xFF800000 : f32
      %60 = vector.broadcast %cst_44 : f32 to vector<16x1xf32>
      %c0_45 = arith.constant 0 : index
      %c0_46 = arith.constant 0 : index
      %61 = vector.load %arg10[%c0_45, %c0_46] : memref<16x1xf32, #tpu.memory_space<vmem>>, vector<16x1xf32>
      tpu.vector_store %arg10[%c0_45, %c0_46], %60 {strides = array<i32>} : memref<16x1xf32, #tpu.memory_space<vmem>>, vector<16x1xf32>,
      %cst_47 = arith.constant 0.000000e+00 : f32
      %62 = vector.broadcast %cst_47 : f32 to vector<16x1xf32>
      %c0_48 = arith.constant 0 : index
      %c0_49 = arith.constant 0 : index
      %63 = vector.load %arg11[%c0_48, %c0_49] : memref<16x1xf32, #tpu.memory_space<vmem>>, vector<16x1xf32>
      tpu.vector_store %arg11[%c0_48, %c0_49], %62 {strides = array<i32>} : memref<16x1xf32, #tpu.memory_space<vmem>>, vector<16x1xf32>,
      %cst_50 = arith.constant 0.000000e+00 : f32
      %64 = vector.broadcast %cst_50 : f32 to vector<16x1xf32>
      %c0_51 = arith.constant 0 : index
      %c0_52 = arith.constant 0 : index
      %65 = vector.load %arg12[%c0_51, %c0_52] : memref<16x1xf32, #tpu.memory_space<vmem>>, vector<16x1xf32>
      tpu.vector_store %arg12[%c0_51, %c0_52], %64 {strides = array<i32>} : memref<16x1xf32, #tpu.memory_space<vmem>>, vector<16x1xf32>,
    } else {
    }
    %c0 = arith.constant 0 : index
    %c0_1 = arith.constant 0 : index
    %3 = memref.load %arg2[%c0, %c0_1] : memref<1x1xf32, #tpu.memory_space<smem>>
    %c0_2 = arith.constant 0 : index
    %c0_3 = arith.constant 0 : index
    %4 = vector.load %arg3[%c0_2, %c0_3] : memref<16x32xf32, #tpu.memory_space<vmem>>, vector<16x32xf32>
    %5 = vector.broadcast %3 : f32 to vector<16x32xf32>
    %6 = arith.mulf %4, %5 : vector<16x32xf32>
    %7 = arith.truncf %6 : vector<16x32xf32> to vector<16x32xbf16>
    %c0_4 = arith.constant 0 : index
    %c0_5 = arith.constant 0 : index
    %8 = vector.load %arg4[%c0_4, %c0_5] : memref<16x32xf32, #tpu.memory_space<vmem>>, vector<16x32xf32>
    %9 = arith.truncf %8 : vector<16x32xf32> to vector<16x32xbf16>
    %c0_6 = arith.constant 0 : index
    %c0_7 = arith.constant 0 : index
    %10 = vector.load %arg5[%c0_6, %c0_7] : memref<32x128xbf16, #tpu.memory_space<vmem>>, vector<32x128xbf16>
    %cst = arith.constant dense<0.000000e+00> : vector<16x128xf32>
    %11 = tpu.matmul %7, %10, %cst {dimension_numbers = #tpu.dot_dimension_numbers<[1], [0], [0], [1], [0, 0, 1, 1], [], []>} : vector<16x32xbf16>, vector<32x128xbf16>, vector<16x128xf32> -> vector<16x128xf32>
    %c0_8 = arith.constant 0 : index
    %c0_9 = arith.constant 0 : index
    %12 = vector.load %arg6[%c0_8, %c0_9] : memref<32x128xbf16, #tpu.memory_space<vmem>>, vector<32x128xbf16>
    %cst_10 = arith.constant dense<0.000000e+00> : vector<16x128xf32>
    %13 = tpu.matmul %9, %12, %cst_10 {dimension_numbers = #tpu.dot_dimension_numbers<[1], [0], [0], [1], [0, 0, 1, 1], [], []>} : vector<16x32xbf16>, vector<32x128xbf16>, vector<16x128xf32> -> vector<16x128xf32>
    %c0_11 = arith.constant 0 : index
    %c0_12 = arith.constant 0 : index
    %14 = vector.load %arg8[%c0_11, %c0_12] : memref<16x1xf32, #tpu.memory_space<vmem>>, vector<16x1xf32>
    %cst_13 = arith.constant dense<0xFF800000> : vector<16xf32>
    %15 = vector.multi_reduction <maximumf>, %11, %cst_13 [1] : vector<16x128xf32> to vector<16xf32>
    %16 = vector.shape_cast %15 : vector<16xf32> to vector<16x1xf32>
    %17 = arith.maximumf %14, %16 : vector<16x1xf32>
    %c0_14 = arith.constant 0 : index
    %c0_15 = arith.constant 0 : index
    %18 = vector.load %arg9[%c0_14, %c0_15] : memref<16x1xf32, #tpu.memory_space<vmem>>, vector<16x1xf32>
    %19 = arith.subf %14, %17 : vector<16x1xf32>
    %20 = math.exp %19 : vector<16x1xf32>
    %21 = arith.mulf %18, %20 : vector<16x1xf32>
    %22 = vector.broadcast %17 : vector<16x1xf32> to vector<16x128xf32>
    %23 = arith.subf %11, %22 : vector<16x128xf32>
    %24 = math.exp %23 : vector<16x128xf32>
    %cst_16 = arith.constant dense<0.000000e+00> : vector<16xf32>
    %25 = vector.multi_reduction <add>, %24, %cst_16 [1] : vector<16x128xf32> to vector<16xf32>
    %26 = vector.shape_cast %25 : vector<16xf32> to vector<16x1xf32>
    %27 = arith.addf %21, %26 : vector<16x1xf32>
    %c0_17 = arith.constant 0 : index
    %c0_18 = arith.constant 0 : index
    %28 = vector.load %arg9[%c0_17, %c0_18] : memref<16x1xf32, #tpu.memory_space<vmem>>, vector<16x1xf32>
    tpu.vector_store %arg9[%c0_17, %c0_18], %27 {strides = array<i32>} : memref<16x1xf32, #tpu.memory_space<vmem>>, vector<16x1xf32>,
    %c0_19 = arith.constant 0 : index
    %c0_20 = arith.constant 0 : index
    %29 = vector.load %arg8[%c0_19, %c0_20] : memref<16x1xf32, #tpu.memory_space<vmem>>, vector<16x1xf32>
    tpu.vector_store %arg8[%c0_19, %c0_20], %17 {strides = array<i32>} : memref<16x1xf32, #tpu.memory_space<vmem>>, vector<16x1xf32>,
    %c0_21 = arith.constant 0 : index
    %c0_22 = arith.constant 0 : index
    %30 = vector.load %arg10[%c0_21, %c0_22] : memref<16x1xf32, #tpu.memory_space<vmem>>, vector<16x1xf32>
    %cst_23 = arith.constant dense<0xFF800000> : vector<16xf32>
    %31 = vector.multi_reduction <maximumf>, %13, %cst_23 [1] : vector<16x128xf32> to vector<16xf32>
    %32 = vector.shape_cast %31 : vector<16xf32> to vector<16x1xf32>
    %33 = arith.maximumf %30, %32 : vector<16x1xf32>
    %34 = arith.subf %30, %33 : vector<16x1xf32>
    %35 = math.exp %34 : vector<16x1xf32>
    %36 = vector.broadcast %33 : vector<16x1xf32> to vector<16x128xf32>
    %37 = arith.subf %13, %36 : vector<16x128xf32>
    %38 = math.exp %37 : vector<16x128xf32>
    %c0_24 = arith.constant 0 : index
    %c0_25 = arith.constant 0 : index
    %39 = vector.load %arg11[%c0_24, %c0_25] : memref<16x1xf32, #tpu.memory_space<vmem>>, vector<16x1xf32>
    %40 = arith.mulf %39, %35 : vector<16x1xf32>
    %cst_26 = arith.constant dense<0.000000e+00> : vector<16xf32>
    %41 = vector.multi_reduction <add>, %38, %cst_26 [1] : vector<16x128xf32> to vector<16xf32>
    %42 = vector.shape_cast %41 : vector<16xf32> to vector<16x1xf32>
    %43 = arith.addf %40, %42 : vector<16x1xf32>
    %c0_27 = arith.constant 0 : index
    %c0_28 = arith.constant 0 : index
    %44 = vector.load %arg11[%c0_27, %c0_28] : memref<16x1xf32, #tpu.memory_space<vmem>>, vector<16x1xf32>
    tpu.vector_store %arg11[%c0_27, %c0_28], %43 {strides = array<i32>} : memref<16x1xf32, #tpu.memory_space<vmem>>, vector<16x1xf32>,
    %c0_29 = arith.constant 0 : index
    %c0_30 = arith.constant 0 : index
    %45 = vector.load %arg12[%c0_29, %c0_30] : memref<16x1xf32, #tpu.memory_space<vmem>>, vector<16x1xf32>
    %46 = arith.mulf %45, %35 : vector<16x1xf32>
    %47 = arith.mulf %38, %11 : vector<16x128xf32>
    %cst_31 = arith.constant dense<0.000000e+00> : vector<16xf32>
    %48 = vector.multi_reduction <add>, %47, %cst_31 [1] : vector<16x128xf32> to vector<16xf32>
    %49 = vector.shape_cast %48 : vector<16xf32> to vector<16x1xf32>
    %50 = arith.addf %46, %49 : vector<16x1xf32>
    %c0_32 = arith.constant 0 : index
    %c0_33 = arith.constant 0 : index
    %51 = vector.load %arg12[%c0_32, %c0_33] : memref<16x1xf32, #tpu.memory_space<vmem>>, vector<16x1xf32>
    tpu.vector_store %arg12[%c0_32, %c0_33], %50 {strides = array<i32>} : memref<16x1xf32, #tpu.memory_space<vmem>>, vector<16x1xf32>,
    %c0_34 = arith.constant 0 : index
    %c0_35 = arith.constant 0 : index
    %52 = vector.load %arg10[%c0_34, %c0_35] : memref<16x1xf32, #tpu.memory_space<vmem>>, vector<16x1xf32>
    tpu.vector_store %arg10[%c0_34, %c0_35], %33 {strides = array<i32>} : memref<16x1xf32, #tpu.memory_space<vmem>>, vector<16x1xf32>,
    %c0_i32_36 = arith.constant 0 : i32
    %53 = arith.cmpi eq, %arg1, %c0_i32_36 : i32
    %54 = arith.extui %53 : i1 to i32
    %c0_i32_37 = arith.constant 0 : i32
    %55 = arith.cmpi ne, %54, %c0_i32_37 : i32
    scf.if %55 {
      %c0_38 = arith.constant 0 : index
      %c0_39 = arith.constant 0 : index
      %56 = vector.load %arg8[%c0_38, %c0_39] : memref<16x1xf32, #tpu.memory_space<vmem>>, vector<16x1xf32>
      %c0_40 = arith.constant 0 : index
      %c0_41 = arith.constant 0 : index
      %57 = vector.load %arg9[%c0_40, %c0_41] : memref<16x1xf32, #tpu.memory_space<vmem>>, vector<16x1xf32>
      %58 = math.log %57 : vector<16x1xf32>
      %59 = arith.addf %56, %58 : vector<16x1xf32>
      %c0_42 = arith.constant 0 : index
      %c0_43 = arith.constant 0 : index
      %60 = vector.load %arg12[%c0_42, %c0_43] : memref<16x1xf32, #tpu.memory_space<vmem>>, vector<16x1xf32>
      %c0_44 = arith.constant 0 : index
      %c0_45 = arith.constant 0 : index
      %61 = vector.load %arg11[%c0_44, %c0_45] : memref<16x1xf32, #tpu.memory_space<vmem>>, vector<16x1xf32>
      %62 = arith.divf %60, %61 : vector<16x1xf32>
      %63 = arith.subf %59, %62 : vector<16x1xf32>
      %c16_i32 = arith.constant 16 : i32
      %64 = arith.muli %arg0, %c16_i32 : i32
      %65 = tpu.iota {dimensions = array<i32: 0>} : vector<16x1xi32>
      %66 = vector.broadcast %64 : i32 to vector<16x1xi32>
      %67 = arith.addi %66, %65 : vector<16x1xi32>
      %c16_i32_46 = arith.constant 16 : i32
      %68 = vector.broadcast %c16_i32_46 : i32 to vector<16x1xi32>
      %69 = arith.cmpi slt, %67, %68 : vector<16x1xi32>
      %cst_47 = arith.constant 0.000000e+00 : f32
      %70 = vector.broadcast %cst_47 : f32 to vector<16x1xf32>
      %71 = arith.select %69, %63, %70 : vector<16x1xi1>, vector<16x1xf32>
      %cst_48 = arith.constant dense<0.000000e+00> : vector<1xf32>
      %72 = vector.multi_reduction <add>, %71, %cst_48 [0] : vector<16x1xf32> to vector<1xf32>
      %73 = vector.shape_cast %72 : vector<1xf32> to vector<1x1xf32>
      %74 = vector.shape_cast %73 : vector<1x1xf32> to vector<1x1x1xf32>
      %c0_49 = arith.constant 0 : index
      %c0_50 = arith.constant 0 : index
      %c0_51 = arith.constant 0 : index
      %75 = vector.load %arg7[%c0_49, %c0_50, %c0_51] : memref<1x1x1xf32, #tpu.memory_space<vmem>>, vector<1x1x1xf32>
      tpu.vector_store %arg7[%c0_49, %c0_50, %c0_51], %74 {strides = array<i32>} : memref<1x1x1xf32, #tpu.memory_space<vmem>>, vector<1x1x1xf32>,
    } else {
    }
    return
  }
  func.func @transform_0(%arg0: i32, %arg1: i32) -> (i32, i32) {
    %c0_i32 = arith.constant 0 : i32
    %c0_i32_0 = arith.constant 0 : i32
    %c0_i32_1 = arith.constant 0 : i32
    return %c0_i32, %c0_i32_0 : i32, i32
  }
  func.func @transform_1(%arg0: i32, %arg1: i32) -> (i32, i32) {
    %c0_i32 = arith.constant 0 : i32
    %c0_i32_0 = arith.constant 0 : i32
    return %arg0, %c0_i32 : i32, i32
  }
  func.func @transform_2(%arg0: i32, %arg1: i32) -> (i32, i32) {
    %c0_i32 = arith.constant 0 : i32
    %c0_i32_0 = arith.constant 0 : i32
    return %arg0, %c0_i32 : i32, i32
  }
  func.func @transform_3(%arg0: i32, %arg1: i32) -> (i32, i32) {
    %c0_i32 = arith.constant 0 : i32
    %c0_i32_0 = arith.constant 0 : i32
    return %c0_i32, %arg1 : i32, i32
  }
  func.func @transform_4(%arg0: i32, %arg1: i32) -> (i32, i32) {
    %c0_i32 = arith.constant 0 : i32
    %c0_i32_0 = arith.constant 0 : i32
    return %c0_i32, %arg1 : i32, i32
  }
  func.func @transform_5(%arg0: i32, %arg1: i32) -> (i32, i32, i32) {
    %c0_i32 = arith.constant 0 : i32
    %c0_i32_0 = arith.constant 0 : i32
    %c0_i32_1 = arith.constant 0 : i32
    return %arg0, %c0_i32, %c0_i32_0 : i32, i32, i32
  }
}

</mosaic_0001>

<llo_original>
// kernel: tpu_custom_call.1
$region0: #{tpu_custom_call.1}
  #allocation0 [shape = 'u32[]', space=smem, size = 0x4, offset = 0x4, fixed_abs, tag = 'smem constant byte address 0x4 - core index']
  #allocation1 [shape = 'u32[144,128]{1,0:T(1,128)}', space=vmem, size = 0x12000, scoped, tag = 'internal scratch']
  #allocation2 [shape = 'f32[16,1]{1,0:T(8,128)}', space=vmem, size = 0x2000, scoped, tag = 'scratch operand']
  #allocation3 [shape = 'f32[16,1]{1,0:T(8,128)}', space=vmem, size = 0x2000, scoped, tag = 'scratch operand']
  #allocation4 [shape = 'f32[16,1]{1,0:T(8,128)}', space=vmem, size = 0x2000, scoped, tag = 'scratch operand']
  #allocation5 [shape = 'f32[16,1]{1,0:T(8,128)}', space=vmem, size = 0x2000, scoped, tag = 'scratch operand']
  #allocation6 [shape = 'f32[16,1]{1,0:T(8,128)}', space=vmem, size = 0x2000, scoped, tag = 'scratch operand']
  #allocation7 [shape = 'f32[1,1]{1,0:T(1,128)S(6)}', space=smem, size = 0x200, scoped, tag = 'scoped memory for tpu_custom_call.1']
  %s0 = inlined_call_operand.<no memory space> [shape: f32[1,1], index: 0, kind: input, shape index: {}]
  %s1 = inlined_call_operand.hbm [shape: f32[16,32], index: 1, kind: input, shape index: {}]
  %s2 = inlined_call_operand.hbm [shape: f32[16,32], index: 2, kind: input, shape index: {}]
  %s3 = inlined_call_operand.hbm [shape: bf16[32,128], index: 3, kind: input, shape index: {}]
  %s4 = inlined_call_operand.hbm [shape: bf16[32,128], index: 4, kind: input, shape index: {}]
  %s5 = inlined_call_operand.hbm [shape: f32[1,1,1], index: 5, kind: output, shape index: {}]
  %s6 = sld [smem:[#allocation0]]
  $region54: #{tpu_custom_call.1} parent=0
    _
  %s8 = ssub.s32 1, %s6
  %s9 = scalar_select 0, %s8, %s6
  %10 = sst [smem:[#allocation7]] %s0
  $region1: #{tpu_custom_call.1} parent=0
    #allocation8 [shape = 'u8[8192]{0}', space=vmem, size = 0x2000, scoped, tag = 'input window, operand 1, single buffered']
    #allocation9 [shape = 's32[1]{0}', space=sflag, size = 0x4, scoped, tag = 'scoped memory for tpu_custom_call.1']
    #allocation10 [shape = 's32[1]{0}', space=sflag, size = 0x4, scoped, tag = 'scoped memory for tpu_custom_call.1']
    #allocation11 [shape = 'u8[8192]{0}', space=vmem, size = 0x2000, scoped, tag = 'input window, operand 2, single buffered']
    #allocation12 [shape = 's32[1]{0}', space=sflag, size = 0x4, scoped, tag = 'scoped memory for tpu_custom_call.1']
    #allocation13 [shape = 'u8[8192]{0}', space=vmem, size = 0x2000, scoped, tag = 'input window, operand 3, single buffered']
    #allocation14 [shape = 'u8[8192]{0}', space=vmem, size = 0x2000, scoped, tag = 'input window, operand 4, single buffered']
    #allocation15 [shape = 's32[1]{0}', space=sflag, size = 0x4, scoped, tag = 'scoped memory for tpu_custom_call.1']
    #allocation16 [shape = 'u8[512]{0}', space=vmem, size = 0x400, scoped, tag = 'output window, operand 0, single buffered']
    %11 = vsyncpa [#allocation9], 0
    %12 = vsyncpa [#allocation12], 0
    %13 = vsyncpa [#allocation15], 0
    %14 = vsyncpa [#allocation10], 0
    // Predicated region
    $region2: #{tpu_custom_call.1} parent=1 // pred_check
      _
    $region3: #{tpu_custom_call.1} parent=1 // pred_check_branch
      %16 = sbr.rel (0) target = $region5
    $region4: #{tpu_custom_call.1} parent=1 // pred_region
      _
    $region5: #{tpu_custom_call.1} parent=1 // pred_fallthru
      _
    // Predicated region
    $region6: #{tpu_custom_call.1} parent=1 // pred_check
      _
    $region7: #{tpu_custom_call.1} parent=1 // pred_check_branch
      %18 = sbr.rel (0) target = $region9
    $region8: #{tpu_custom_call.1} parent=1 // pred_region
      %s20 = ssub.s32 256, 256
      %21 = vsyncadd [#allocation9], %s20
      %s22 = sshll.u32 [#allocation8], 4
      %s23 = int_to_ptr.vmem [resolvable:$true] %s22
      %28 = dma.hbm_to_vmem [thread:$0]  %s1, 256, %s23, [#allocation9], 128, 128, 8
    $region9: #{tpu_custom_call.1} parent=1 // pred_fallthru
      _
    // Predicated region
    $region10: #{tpu_custom_call.1} parent=1 // pred_check
      _
    $region11: #{tpu_custom_call.1} parent=1 // pred_check_branch
      %30 = sbr.rel (0) target = $region13
    $region12: #{tpu_custom_call.1} parent=1 // pred_region
      %s32 = ssub.s32 256, 256
      %33 = vsyncadd [#allocation12], %s32
      %s34 = sshll.u32 [#allocation11], 4
      %s35 = int_to_ptr.vmem [resolvable:$true] %s34
      %40 = dma.hbm_to_vmem [thread:$0]  %s2, 256, %s35, [#allocation12], 128, 128, 8
    $region13: #{tpu_custom_call.1} parent=1 // pred_fallthru
      _
    // Predicated region
    $region14: #{tpu_custom_call.1} parent=1 // pred_check
      _
    $region15: #{tpu_custom_call.1} parent=1 // pred_check_branch
      %42 = sbr.rel (0) target = $region17
    $region16: #{tpu_custom_call.1} parent=1 // pred_region
      %s44 = ssub.s32 256, 256
      %45 = vsyncadd [#allocation12], %s44
      %s46 = sshll.u32 [#allocation13], 4
      %s47 = int_to_ptr.vmem [resolvable:$true] %s46
      %52 = dma.hbm_to_vmem [thread:$0]  %s3, 256, %s47, [#allocation12], 64, 64, 4
    $region17: #{tpu_custom_call.1} parent=1 // pred_fallthru
      _
    // Predicated region
    $region18: #{tpu_custom_call.1} parent=1 // pred_check
      _
    $region19: #{tpu_custom_call.1} parent=1 // pred_check_branch
      %54 = sbr.rel (0) target = $region21
    $region20: #{tpu_custom_call.1} parent=1 // pred_region
      %s56 = ssub.s32 256, 256
      %57 = vsyncadd [#allocation15], %s56
      %s58 = sshll.u32 [#allocation14], 4
      %s59 = int_to_ptr.vmem [resolvable:$true] %s58
      %64 = dma.hbm_to_vmem [thread:$0]  %s4, 256, %s59, [#allocation15], 64, 64, 4
    $region21: #{tpu_custom_call.1} parent=1 // pred_fallthru
      _
    // Predicated region
    $region22: #{tpu_custom_call.1} parent=1 // pred_check
      _
    $region23: #{tpu_custom_call.1} parent=1 // pred_check_branch
      %66 = sbr.rel (0) target = $region25
    $region24: #{tpu_custom_call.1} parent=1 // pred_region
      %67 = dma.done [#allocation9], 256
    $region25: #{tpu_custom_call.1} parent=1 // pred_fallthru
      _
    // Predicated region
    $region26: #{tpu_custom_call.1} parent=1 // pred_check
      _
    $region27: #{tpu_custom_call.1} parent=1 // pred_check_branch
      %69 = sbr.rel (0) target = $region29
    $region28: #{tpu_custom_call.1} parent=1 // pred_region
      %70 = dma.done [#allocation12], 256
    $region29: #{tpu_custom_call.1} parent=1 // pred_fallthru
      _
    // Predicated region
    $region30: #{tpu_custom_call.1} parent=1 // pred_check
      _
    $region31: #{tpu_custom_call.1} parent=1 // pred_check_branch
      %72 = sbr.rel (0) target = $region33
    $region32: #{tpu_custom_call.1} parent=1 // pred_region
      %73 = dma.done [#allocation12], 256
    $region33: #{tpu_custom_call.1} parent=1 // pred_fallthru
      _
    // Predicated region
    $region34: #{tpu_custom_call.1} parent=1 // pred_check
      _
    $region35: #{tpu_custom_call.1} parent=1 // pred_check_branch
      %75 = sbr.rel (0) target = $region37
    $region36: #{tpu_custom_call.1} parent=1 // pred_region
      %76 = dma.done [#allocation15], 256
    $region37: #{tpu_custom_call.1} parent=1 // pred_fallthru
      _
    %p78 = scmp.eq.s32.totalorder 0, 0
    // Predicated region
    $region38: #{tpu_custom_call.1} parent=1 // pred_check
      %p79 = pneg %p78
    $region39: #{tpu_custom_call.1} parent=1 // pred_check_branch
      %81 = sbr.rel (%p79) target = $region41
    $region40: #{tpu_custom_call.1} parent=1 // pred_region
      %vm82 = vcmask 7168
      %83 = vst.msk [vmem:[#allocation2] sm:$0xff] %vm82, -inf
      %84 = vst.msk [vmem:[#allocation2 + $0x8] sm:$0xff] %vm82, -inf
      %85 = vst.msk [vmem:[#allocation3] sm:$0xff] %vm82, 0.0
      %86 = vst.msk [vmem:[#allocation3 + $0x8] sm:$0xff] %vm82, 0.0
      %87 = vst.msk [vmem:[#allocation4] sm:$0xff] %vm82, -inf
      %88 = vst.msk [vmem:[#allocation4 + $0x8] sm:$0xff] %vm82, -inf
      %89 = vst.msk [vmem:[#allocation5] sm:$0xff] %vm82, 0.0
      %90 = vst.msk [vmem:[#allocation5 + $0x8] sm:$0xff] %vm82, 0.0
      %91 = vst.msk [vmem:[#allocation6] sm:$0xff] %vm82, 0.0
      %92 = vst.msk [vmem:[#allocation6 + $0x8] sm:$0xff] %vm82, 0.0
    $region41: #{tpu_custom_call.1} parent=1 // pred_fallthru
      _
    %s93 = sld [smem:[#allocation7]]
    %v94 = vld [vmem:[#allocation8] sm:$0xff]
    %v95 = vld [vmem:[#allocation8 + $0x8] sm:$0xff]
    %v96 = vstv %s93
    %v97 = vmul.f32 %v94, %v96
    %v98 = vmul.f32 %v95, %v96
    %v99 = vpack.c.bf16 %v98, %v97
    %v100 = vld [vmem:[#allocation11] sm:$0xff]
    %v101 = vld [vmem:[#allocation11 + $0x8] sm:$0xff]
    %v102 = vpack.c.bf16 %v101, %v100
    %v103 = vld [vmem:[#allocation13] sm:$0xf]
    %v104 = vld [vmem:[#allocation13 + $0x4] sm:$0xf]
    %v105 = vld [vmem:[#allocation13 + $0x8] sm:$0xf]
    %v106 = vld [vmem:[#allocation13 + $0xc] sm:$0xf]
    %v111 = vunpack.c.l.b16 %v103
    %v112 = vunpack.c.l.b16 %v104
    %v113 = vunpack.c.l.b16 %v105
    %v114 = vunpack.c.l.b16 %v106
    %v115 = vpack.c.b16 %v112, %v111
    %v116 = vpack.c.b16 %v114, %v113
    %vm119 = vcmask 261120
    %v121 = vsel %vm119, %v99, 0
    %123 = vmatprep.subr.bf16.mxu0 0
    %124 = vmatpush1.bf16.msra.mxu0 %v115
    %125 = vmatprep.subr.bf16.mxu0 0
    %126 = vmatpush1.bf16.msra.mxu0 %v116
    %127 = vmatprep.subr.bf16.mxu0 0
    %128 = vmatpush1.bf16.msra.mxu0 0
    %129 = vmatprep.subr.bf16.mxu0 0
    %130 = vmatpush1.bf16.msra.mxu0 0
    %131 = vmatprep.subr.bf16.mxu0 0
    %132 = vmatpush1.bf16.msra.mxu0 0
    %133 = vmatprep.subr.bf16.mxu0 0
    %134 = vmatpush1.bf16.msra.mxu0 0
    %135 = vmatprep.subr.bf16.mxu0 0
    %136 = vmatpush1.bf16.msra.mxu0 0
    %137 = vmatprep.subr.bf16.mxu0 0
    %138 = vmatpush1.bf16.msra.mxu0 0
    %139 = vmatprep.subr.bf16.mxu0 0
    %140 = vmatpush1.bf16.msra.mxu0 0
    %141 = vmatprep.subr.bf16.mxu0 0
    %142 = vmatpush1.bf16.msra.mxu0 0
    %143 = vmatprep.subr.bf16.mxu0 0
    %144 = vmatpush1.bf16.msra.mxu0 0
    %145 = vmatprep.subr.bf16.mxu0 0
    %146 = vmatpush1.bf16.msra.mxu0 0
    %147 = vmatprep.subr.bf16.mxu0 0
    %148 = vmatpush1.bf16.msra.mxu0 0
    %149 = vmatprep.subr.bf16.mxu0 0
    %150 = vmatpush1.bf16.msra.mxu0 0
    %151 = vmatprep.subr.bf16.mxu0 0
    %152 = vmatpush1.bf16.msra.mxu0 0
    %153 = vmatprep.subr.bf16.mxu0 0
    %154 = vmatpush1.bf16.msra.mxu0 0
    %155 = vmatprep.mubr.bf16.mxu0 0
    %156 = vmatmul.mubr.bf16.gmra.mrb[0].mxu0 %v121
    %v157 = vpop.f32.mrb[0].mxu0
    %v158 = vadd.f32 0.0, %v157
    %v159 = vpop.f32.mrb[0].mxu0
    %v160 = vpop.f32.mrb[0].mxu0
    %v161 = vadd.f32 0.0, %v160
    %v162 = vpop.f32.mrb[0].mxu0
    %163 = vdwg.mxu0
    %v164 = vld [vmem:[#allocation14] sm:$0xf]
    %v165 = vld [vmem:[#allocation14 + $0x4] sm:$0xf]
    %v166 = vld [vmem:[#allocation14 + $0x8] sm:$0xf]
    %v167 = vld [vmem:[#allocation14 + $0xc] sm:$0xf]
    %v172 = vunpack.c.l.b16 %v164
    %v173 = vunpack.c.l.b16 %v165
    %v174 = vunpack.c.l.b16 %v166
    %v175 = vunpack.c.l.b16 %v167
    %v176 = vpack.c.b16 %v173, %v172
    %v177 = vpack.c.b16 %v175, %v174
    %v181 = vsel %vm119, %v102, 0
    %183 = vmatprep.subr.bf16.mxu0 0
    %184 = vmatpush1.bf16.msra.mxu0 %v176
    %185 = vmatprep.subr.bf16.mxu0 0
    %186 = vmatpush1.bf16.msra.mxu0 %v177
    %187 = vmatprep.subr.bf16.mxu0 0
    %188 = vmatpush1.bf16.msra.mxu0 0
    %189 = vmatprep.subr.bf16.mxu0 0
    %190 = vmatpush1.bf16.msra.mxu0 0
    %191 = vmatprep.subr.bf16.mxu0 0
    %192 = vmatpush1.bf16.msra.mxu0 0
    %193 = vmatprep.subr.bf16.mxu0 0
    %194 = vmatpush1.bf16.msra.mxu0 0
    %195 = vmatprep.subr.bf16.mxu0 0
    %196 = vmatpush1.bf16.msra.mxu0 0
    %197 = vmatprep.subr.bf16.mxu0 0
    %198 = vmatpush1.bf16.msra.mxu0 0
    %199 = vmatprep.subr.bf16.mxu0 0
    %200 = vmatpush1.bf16.msra.mxu0 0
    %201 = vmatprep.subr.bf16.mxu0 0
    %202 = vmatpush1.bf16.msra.mxu0 0
    %203 = vmatprep.subr.bf16.mxu0 0
    %204 = vmatpush1.bf16.msra.mxu0 0
    %205 = vmatprep.subr.bf16.mxu0 0
    %206 = vmatpush1.bf16.msra.mxu0 0
    %207 = vmatprep.subr.bf16.mxu0 0
    %208 = vmatpush1.bf16.msra.mxu0 0
    %209 = vmatprep.subr.bf16.mxu0 0
    %210 = vmatpush1.bf16.msra.mxu0 0
    %211 = vmatprep.subr.bf16.mxu0 0
    %212 = vmatpush1.bf16.msra.mxu0 0
    %213 = vmatprep.subr.bf16.mxu0 0
    %214 = vmatpush1.bf16.msra.mxu0 0
    %215 = vmatprep.mubr.bf16.mxu0 0
    %216 = vmatmul.mubr.bf16.gmra.mrb[0].mxu0 %v181
    %v217 = vpop.f32.mrb[0].mxu0
    %v218 = vadd.f32 0.0, %v217
    %v219 = vpop.f32.mrb[0].mxu0
    %v220 = vpop.f32.mrb[0].mxu0
    %v221 = vadd.f32 0.0, %v220
    %v222 = vpop.f32.mrb[0].mxu0
    %223 = vdwg.mxu0
    %v224 = vld [vmem:[#allocation2] sm:$0xff]
    %v225 = vld [vmem:[#allocation2 + $0x8] sm:$0xff]
    %226 = vmax.xlane.f32.xlu0 %v158
    %v227 = vpop.xlane.xlu0 %226
    %228 = vmax.xlane.f32.xlu0 %v161
    %v229 = vpop.xlane.xlu0 %228
    %v230 = vmax.f32 %v224, %v227
    %v231 = vmax.f32 %v225, %v229
    %v232 = vld [vmem:[#allocation3] sm:$0xff]
    %v233 = vld [vmem:[#allocation3 + $0x8] sm:$0xff]
    %v234 = vsub.f32 %v224, %v230
    %v235 = vsub.f32 %v225, %v231
    %v236 = vmul.f32 %v234, 1.442695
    %v237 = vpow.pop %v236
    %v238 = vmul.f32 %v235, 1.442695
    %v239 = vpow.pop %v238
    %v240 = vmul.f32 %v232, %v237
    %v241 = vmul.f32 %v233, %v239
    %243 = vset.pattern.permute.xlu0 0
    %244 = vperm.xlu0 %243, %v230
    %v245 = vpop.permute.xlu0 %244
    %248 = vset.pattern.permute.xlu0 0
    %249 = vperm.xlu0 %248, %v231
    %v250 = vpop.permute.xlu0 %249
    %v252 = vsub.f32 %v158, %v245
    %v253 = vsub.f32 %v161, %v250
    %v254 = vmul.f32 %v252, 1.442695
    %v255 = vpow.pop %v254
    %v256 = vmul.f32 %v253, 1.442695
    %v257 = vpow.pop %v256
    %258 = vadd.xlane.f32.xlu0 %v255
    %v259 = vpop.xlane.xlu0 %258
    %260 = vadd.xlane.f32.xlu0 %v257
    %v261 = vpop.xlane.xlu0 %260
    %v262 = vadd.f32 %v240, %v259
    %v263 = vadd.f32 %v241, %v261
    %vm264 = vcmask 7168
    %265 = vst.msk [vmem:[#allocation3] sm:$0xff] %vm264, %v262
    %266 = vst.msk [vmem:[#allocation3 + $0x8] sm:$0xff] %vm264, %v263
    %267 = vst.msk [vmem:[#allocation2] sm:$0xff] %vm264, %v230
    %268 = vst.msk [vmem:[#allocation2 + $0x8] sm:$0xff] %vm264, %v231
    %v269 = vld [vmem:[#allocation4] sm:$0xff]
    %v270 = vld [vmem:[#allocation4 + $0x8] sm:$0xff]
    %271 = vmax.xlane.f32.xlu0 %v218
    %v272 = vpop.xlane.xlu0 %271
    %273 = vmax.xlane.f32.xlu0 %v221
    %v274 = vpop.xlane.xlu0 %273
    %v275 = vmax.f32 %v269, %v272
    %v276 = vmax.f32 %v270, %v274
    %v277 = vsub.f32 %v269, %v275
    %v278 = vsub.f32 %v270, %v276
    %v279 = vmul.f32 %v277, 1.442695
    %v280 = vpow.pop %v279
    %v281 = vmul.f32 %v278, 1.442695
    %v282 = vpow.pop %v281
    %284 = vset.pattern.permute.xlu0 0
    %285 = vperm.xlu0 %284, %v275
    %v286 = vpop.permute.xlu0 %285
    %289 = vset.pattern.permute.xlu0 0
    %290 = vperm.xlu0 %289, %v276
    %v291 = vpop.permute.xlu0 %290
    %v293 = vsub.f32 %v218, %v286
    %v294 = vsub.f32 %v221, %v291
    %v295 = vmul.f32 %v293, 1.442695
    %v296 = vpow.pop %v295
    %v297 = vmul.f32 %v294, 1.442695
    %v298 = vpow.pop %v297
    %v299 = vld [vmem:[#allocation5] sm:$0xff]
    %v300 = vld [vmem:[#allocation5 + $0x8] sm:$0xff]
    %v301 = vmul.f32 %v299, %v280
    %v302 = vmul.f32 %v300, %v282
    %303 = vadd.xlane.f32.xlu0 %v296
    %v304 = vpop.xlane.xlu0 %303
    %305 = vadd.xlane.f32.xlu0 %v298
    %v306 = vpop.xlane.xlu0 %305
    %v307 = vadd.f32 %v301, %v304
    %v308 = vadd.f32 %v302, %v306
    %309 = vst.msk [vmem:[#allocation5] sm:$0xff] %vm264, %v307
    %310 = vst.msk [vmem:[#allocation5 + $0x8] sm:$0xff] %vm264, %v308
    %v311 = vld [vmem:[#allocation6] sm:$0xff]
    %v312 = vld [vmem:[#allocation6 + $0x8] sm:$0xff]
    %v313 = vmul.f32 %v311, %v280
    %v314 = vmul.f32 %v312, %v282
    %v315 = vmul.f32 %v296, %v158
    %v316 = vmul.f32 %v298, %v161
    %317 = vadd.xlane.f32.xlu0 %v315
    %v318 = vpop.xlane.xlu0 %317
    %319 = vadd.xlane.f32.xlu0 %v316
    %v320 = vpop.xlane.xlu0 %319
    %v321 = vadd.f32 %v313, %v318
    %v322 = vadd.f32 %v314, %v320
    %323 = vst.msk [vmem:[#allocation6] sm:$0xff] %vm264, %v321
    %324 = vst.msk [vmem:[#allocation6 + $0x8] sm:$0xff] %vm264, %v322
    %325 = vst.msk [vmem:[#allocation4] sm:$0xff] %vm264, %v275
    %326 = vst.msk [vmem:[#allocation4 + $0x8] sm:$0xff] %vm264, %v276
    // Predicated region
    $region42: #{tpu_custom_call.1} parent=1 // pred_check
      %p327 = pneg %p78
    $region43: #{tpu_custom_call.1} parent=1 // pred_check_branch
      %329 = sbr.rel (%p327) target = $region45
    $region44: #{tpu_custom_call.1} parent=1 // pred_region
      %v330 = vld [vmem:[#allocation2] sm:$0xff]
      %v331 = vld [vmem:[#allocation2 + $0x8] sm:$0xff]
      %v332 = vld [vmem:[#allocation3] sm:$0xff]
      %v333 = vld [vmem:[#allocation3 + $0x8] sm:$0xff]
      %v334 = vlog2.pop %v332
      %v335 = vmul.f32 %v334, 0.6931472
      %v336 = vlog2.pop %v333
      %v337 = vmul.f32 %v336, 0.6931472
      %v338 = vadd.f32 %v330, %v335
      %v339 = vadd.f32 %v331, %v337
      %v340 = vld [vmem:[#allocation6] sm:$0xff]
      %v341 = vld [vmem:[#allocation6 + $0x8] sm:$0xff]
      %v342 = vld [vmem:[#allocation5] sm:$0xff]
      %v343 = vld [vmem:[#allocation5 + $0x8] sm:$0xff]
      %v344 = vrcp.pop %v342
      %v345 = vmul.f32 %v340, %v344
      %v346 = vrcp.pop %v343
      %v347 = vmul.f32 %v341, %v346
      %v348 = vsub.f32 %v338, %v345
      %v349 = vsub.f32 %v339, %v347
      %s350 = smul.u32 0, 16
      %v351 = vlaneseq
      %v352 = vshrl.u32 %v351, 7
      %v353 = vadd.s32 %v352, 8
      %v354 = vstv %s350
      %v355 = vadd.s32 %v354, %v352
      %v356 = vadd.s32 %v354, %v353
      %vm357 = vcmp.lt.s32.totalorder %v355, 16
      %vm358 = vcmp.lt.s32.totalorder %v356, 16
      %v359 = vsel %vm357, %v348, 0.0
      %v360 = vsel %vm358, %v349, 0.0
      %v361 = vsel %vm264, %v359, 0.0
      %v362 = vsel %vm264, %v360, 0.0
      %v363 = vadd.f32 %v361, %v362
      %v364 = vrot.slane %v363, 4
      %v365 = vadd.f32 %v363, %v364
      %v366 = vrot.slane %v365, 2
      %v367 = vadd.f32 %v365, %v366
      %v368 = vrot.slane %v367, 1
      %v369 = vadd.f32 %v367, %v368
      %vm370 = vcmask 0
      %371 = vst.msk [vmem:[#allocation16] sm:$0x1] %vm370, %v369
    $region45: #{tpu_custom_call.1} parent=1 // pred_fallthru
      _
    // Predicated region
    $region46: #{tpu_custom_call.1} parent=1 // pred_check
      _
    $region47: #{tpu_custom_call.1} parent=1 // pred_check_branch
      %373 = sbr.rel (0) target = $region49
    $region48: #{tpu_custom_call.1} parent=1 // pred_region
      %s375 = ssub.s32 16, 16
      %376 = vsyncadd [#allocation10], %s375
      %s378 = sshll.u32 [#allocation16], 4
      %s379 = int_to_ptr.vmem [resolvable:$true] %s378
      %381 = dma.vmem_to_hbm [thread:$0]  %s379, 16, %s5, [#allocation10]
    $region49: #{tpu_custom_call.1} parent=1 // pred_fallthru
      _
    // Predicated region
    $region50: #{tpu_custom_call.1} parent=1 // pred_check
      _
    $region51: #{tpu_custom_call.1} parent=1 // pred_check_branch
      %383 = sbr.rel (0) target = $region53
    $region52: #{tpu_custom_call.1} parent=1 // pred_region
      %384 = dma.done [#allocation10], 16
    $region53: #{tpu_custom_call.1} parent=1 // pred_fallthru
      _
    %385 = vsyncpa [#allocation9], 1
    %386 = vsyncpa [#allocation12], 1
    %387 = vsyncpa [#allocation15], 1
    %388 = vsyncpa [#allocation10], 1

</llo_original>
